<compile_context>
chip_gen: v7x
topology: tpu7x:2x2x1
jax: 0.10.0
libtpu: 0.0.40
codegen_flags: <defaults>
</compile_context>

<pallas_src>
import functools

import jax
import jax.numpy as jnp
from jax import lax
from jax.experimental import pallas as pl
from jax.experimental.pallas import tpu as pltpu


def _round_up(x, m):
    return ((x + m - 1) // m) * m


def _tpu_vmem_budget():
    """(per-block VMEM budget, scoped-VMEM limit), generation aware."""
    cap = 64 << 20  # conservative default = v7x per-TC VMEM
    try:
        info = pltpu.get_tpu_info()
        cap = int(getattr(info, "vmem_capacity_bytes", cap))
    except Exception:
        pass
    # Inputs/outputs are double-buffered (default Buffered(2)); keep ample
    # headroom between the block footprint and the scoped limit.
    budget = min(cap // 6, 20 << 20)          # v5e/v6e ~20 MiB, v7x ~10 MiB
    limit = min((cap * 3) // 4, 96 << 20)     # v5e/v6e 96 MiB, v7x 48 MiB
    return budget, limit


def _plan_tiling(Bd, f_out8, f_in, itemsize):
    """Choose (batch chunk Bb, padded batch Bp, f_out tile, padded f_out, limit)."""
    budget, vmem_limit = _tpu_vmem_budget()

    # Bytes per batch lane for a full-f_out block (weights dominate).
    per_lane = (f_in * f_out8 + f_in + 2 * f_out8) * itemsize

    tfo = f_out8
    if 128 * per_lane > budget:
        # Shrink the f_out tile so a 128-lane chunk fits the budget.
        avail = budget // (128 * itemsize) - f_in
        tfo = min(f_out8, max(8, (avail // (f_in + 2)) // 8 * 8))
    f_out_pad = _round_up(f_out8, tfo)

    per_lane_tile = (f_in * tfo + f_in + 2 * tfo) * itemsize

    if Bd < 256 and Bd * per_lane_tile <= budget:
        # Whole batch in one program; block == full lane dim (no 128 constraint).
        Bb, Bp = Bd, Bd
    else:
        Bb = max(128, min(_round_up(Bd, 128),
                          (budget // per_lane_tile) // 128 * 128))
        # Ensure >= 2 chunks for medium/large batches so both v7x TCs get work.
        if Bb >= _round_up(Bd, 128) and Bd >= 256:
            Bb = _round_up((Bd + 1) // 2, 128)
        Bp = _round_up(Bd, Bb)
    return Bb, Bp, tfo, f_out_pad, vmem_limit


def lti_kernel(mt_ref, zt_ref, bt_ref, out_ref):
    # mt_ref : (f_in, tfo, Bb)  fused weights [[A,B],[C,D]] (row-padded),
    #                           batch in the lane (last) dim
    # zt_ref : (f_in, Bb)       fused [x|u]
    # bt_ref : (tfo, Bb)        fused [c1|c2] (row-padded)
    # out_ref: (tfo, Bb)        fused [x_{k+1}|y]
    f_in = mt_ref.shape[0]
    acc = bt_ref[...].astype(jnp.float32)                    # (tfo, Bb)

    def body(k, acc):
        zk = zt_ref[pl.ds(k, 1), :].astype(jnp.float32)       # (1, Bb) sublane bcast
        return acc + mt_ref[k].astype(jnp.float32) * zk       # VPU FMA, lane dense

    if f_in <= 64:
        for k in range(f_in):                                 # static unroll
            acc = body(k, acc)
    else:
        acc = lax.fori_loop(0, f_in, body, acc, unroll=8)
    out_ref[...] = acc.astype(out_ref.dtype)


def lti_prepare(A, B, C, D, c1=None, c2=None, weights_dtype=None):
    """Pack the time-invariant LTI matrices ONCE (call outside the step loop).

    Returns a dict consumed by lti_step().  Set weights_dtype=jnp.bfloat16 to
    halve HBM traffic for the streamed weights (compute stays in f32).
    """
    A, B, C, D = map(jnp.asarray, (A, B, C, D))
    Bd, Sd, _ = A.shape
    Id = B.shape[-1]
    Od = C.shape[-2]
    dtype = A.dtype
    if c1 is None:
        c1 = jnp.zeros((Bd, Sd), dtype)
    if c2 is None:
        c2 = jnp.zeros((Bd, Od), dtype)

    f_in = Sd + Id
    f_out = Sd + Od
    f_out8 = _round_up(f_out, 8)                 # dense sublane tiles / DMA

    w_dtype = jnp.dtype(weights_dtype) if weights_dtype is not None else jnp.dtype(dtype)
    Bb, Bp, tfo, f_out_pad, vmem_limit = _plan_tiling(Bd, f_out8, f_in,
                                                      w_dtype.itemsize)

    # Fuse the four matvecs into one: M = [[A,B],[C,D]], bias = [c1|c2].
    M = jnp.concatenate(
        [jnp.concatenate([A, B], axis=-1),
         jnp.concatenate([C, D], axis=-1)], axis=-2)          # (Bd, f_out, f_in)
    bias = jnp.concatenate([c1, c2], axis=-1)                 # (Bd, f_out)

    # Batch-in-lanes, reduction axis leading (no weight-sized temp in-kernel).
    Mt = jnp.transpose(M, (2, 1, 0)).astype(w_dtype)          # (f_in, f_out, Bd)
    bt = bias.T                                               # (f_out, Bd)

    pad_f = f_out_pad - f_out
    pad_b = Bp - Bd
    if pad_f or pad_b:
        Mt = jnp.pad(Mt, ((0, 0), (0, pad_f), (0, pad_b)))
        bt = jnp.pad(bt, ((0, pad_f), (0, pad_b)))

    cfg = (Sd, Id, Od, Bd, f_in, f_out_pad, tfo, Bb, Bp, vmem_limit)
    return {"Mt": Mt, "bt": bt, "cfg": cfg}


@functools.partial(jax.jit, static_argnames=("cfg",))
def _lti_step_impl(Mt, bt, state, inp, *, cfg):
    (Sd, Id, Od, Bd, f_in, f_out_pad, tfo, Bb, Bp, vmem_limit) = cfg

    # Per-step packing is only the small [x|u] vector (weights packed once).
    z = jnp.concatenate([state, inp], axis=-1)                # (Bd, f_in)
    zt = z.T                                                  # (f_in, Bd)
    if Bp != Bd:
        zt = jnp.pad(zt, ((0, 0), (0, Bp - Bd)))

    num_chunks = Bp // Bb
    num_fo = f_out_pad // tfo

    grid_spec = pltpu.PrefetchScalarGridSpec(
        num_scalar_prefetch=0,
        grid=(num_chunks, num_fo),
        in_specs=[
            pl.BlockSpec((f_in, tfo, Bb), lambda b, j: (0, j, b)),   # weights
            pl.BlockSpec((f_in, Bb), lambda b, j: (0, b)),           # [x|u]
            pl.BlockSpec((tfo, Bb), lambda b, j: (j, b)),            # [c1|c2]
        ],
        out_specs=pl.BlockSpec((tfo, Bb), lambda b, j: (j, b)),
    )

    out_t = pl.pallas_call(
        lti_kernel,
        out_shape=jax.ShapeDtypeStruct((f_out_pad, Bp), state.dtype),
        grid_spec=grid_spec,
        compiler_params=pltpu.CompilerParams(
            dimension_semantics=("parallel", "parallel"),
            vmem_limit_bytes=vmem_limit),
    )(Mt, zt, bt)

    out_t = out_t[:, :Bd]                    # drop lane (batch) padding
    next_state = out_t[:Sd].T                # (Bd, Sd)
    obs = out_t[Sd:Sd + Od].T                # (Bd, Od)
    return next_state, obs


def lti_step(packed, state, inp):
    """One LTI step using weights packed by lti_prepare()."""
    return _lti_step_impl(packed["Mt"], packed["bt"], state, inp,
                          cfg=packed["cfg"])


def lti_forward(A, B, C, D, c1, c2, state, inp, weights_dtype=None):
    """One-shot convenience; prefer lti_prepare() once + lti_step() per step."""
    return lti_step(lti_prepare(A, B, C, D, c1, c2, weights_dtype), state, inp)


if __name__ == "__main__":
    # Batch, State, Input, Observation dims (small, consistent with LTI example)
    Bd, Sd, Id, Od = 2, 8, 4, 6

    key = jax.random.PRNGKey(0)
    kA, kB, kC, kD, kc1, kc2, kx, ku = jax.random.split(key, 8)
    A = jax.random.normal(kA, (Bd, Sd, Sd), jnp.float32)
    B = jax.random.normal(kB, (Bd, Sd, Id), jnp.float32)
    C = jax.random.normal(kC, (Bd, Od, Sd), jnp.float32)
    D = jax.random.normal(kD, (Bd, Od, Id), jnp.float32)
    c1 = jax.random.normal(kc1, (Bd, Sd), jnp.float32)
    c2 = jax.random.normal(kc2, (Bd, Od), jnp.float32)
    state = jax.random.normal(kx, (Bd, Sd), jnp.float32)
    inp = jax.random.normal(ku, (Bd, Id), jnp.float32)

    # Pack the time-invariant weights once; step is the hot path.
    packed = lti_prepare(A, B, C, D, c1, c2)
    next_state, obs = lti_step(packed, state, inp)
    next_state, obs = jax.block_until_ready((next_state, obs))

    # Pure-JAX reference (pp.bmv semantics)
    ref_state = jnp.einsum('bij,bj->bi', A, state) + \
                jnp.einsum('bij,bj->bi', B, inp) + c1
    ref_obs = jnp.einsum('bij,bj->bi', C, state) + \
              jnp.einsum('bij,bj->bi', D, inp) + c2

    assert next_state.shape == (Bd, Sd) and obs.shape == (Bd, Od)
    assert jnp.allclose(next_state, ref_state, atol=1e-5, rtol=1e-5)
    assert jnp.allclose(obs, ref_obs, atol=1e-5, rtol=1e-5)

    # Second step exercises the cached packed weights (no repacking).
    ns2, ob2 = jax.block_until_ready(lti_step(packed, next_state, inp))
    ref_ns2 = jnp.einsum('bij,bj->bi', A, next_state) + \
              jnp.einsum('bij,bj->bi', B, inp) + c1
    assert jnp.allclose(ns2, ref_ns2, atol=1e-5, rtol=1e-5)

    print("KERNEL_OK")
</pallas_src>

<mosaic_0001>
module attributes {stable_mosaic.version = 11 : i64} {
  func.func @lti_kernel(%arg0: i32, %arg1: i32, %arg2: memref<12x16x2xf32, #tpu.memory_space<vmem>>, %arg3: memref<12x2xf32, #tpu.memory_space<vmem>>, %arg4: memref<16x2xf32, #tpu.memory_space<vmem>>, %arg5: memref<16x2xf32, #tpu.memory_space<vmem>>) attributes {dimension_semantics = [#tpu.dimension_semantics<parallel>, #tpu.dimension_semantics<parallel>], iteration_bounds = array<i64: 1, 1>, scalar_prefetch = 0 : i64, scratch_operands = 0 : i64, tpu.core_type = #tpu.core_type<tc>, window_params = [{transform_indices = @transform_0, window_bounds = array<i64: 12, 16, 2>}, {transform_indices = @transform_1, window_bounds = array<i64: 12, 2>}, {transform_indices = @transform_2, window_bounds = array<i64: 16, 2>}, {transform_indices = @transform_3, window_bounds = array<i64: 16, 2>}]} {
    %c0 = arith.constant 0 : index
    %c0_0 = arith.constant 0 : index
    %0 = vector.load %arg4[%c0, %c0_0] : memref<16x2xf32, #tpu.memory_space<vmem>>, vector<16x2xf32>
    %c0_1 = arith.constant 0 : index
    %c0_2 = arith.constant 0 : index
    %1 = vector.load %arg3[%c0_1, %c0_2] : memref<12x2xf32, #tpu.memory_space<vmem>>, vector<1x2xf32>
    %c0_3 = arith.constant 0 : index
    %c0_4 = arith.constant 0 : index
    %c0_5 = arith.constant 0 : index
    %2 = vector.load %arg2[%c0_3, %c0_4, %c0_5] : memref<12x16x2xf32, #tpu.memory_space<vmem>>, vector<1x16x2xf32>
    %3 = vector.shape_cast %2 : vector<1x16x2xf32> to vector<16x2xf32>
    %4 = vector.broadcast %1 : vector<1x2xf32> to vector<16x2xf32>
    %5 = arith.mulf %3, %4 : vector<16x2xf32>
    %6 = arith.addf %0, %5 : vector<16x2xf32>
    %c1 = arith.constant 1 : index
    %c0_6 = arith.constant 0 : index
    %7 = vector.load %arg3[%c1, %c0_6] : memref<12x2xf32, #tpu.memory_space<vmem>>, vector<1x2xf32>
    %c1_7 = arith.constant 1 : index
    %c0_8 = arith.constant 0 : index
    %c0_9 = arith.constant 0 : index
    %8 = vector.load %arg2[%c1_7, %c0_8, %c0_9] : memref<12x16x2xf32, #tpu.memory_space<vmem>>, vector<1x16x2xf32>
    %9 = vector.shape_cast %8 : vector<1x16x2xf32> to vector<16x2xf32>
    %10 = vector.broadcast %7 : vector<1x2xf32> to vector<16x2xf32>
    %11 = arith.mulf %9, %10 : vector<16x2xf32>
    %12 = arith.addf %6, %11 : vector<16x2xf32>
    %c2 = arith.constant 2 : index
    %c0_10 = arith.constant 0 : index
    %13 = vector.load %arg3[%c2, %c0_10] : memref<12x2xf32, #tpu.memory_space<vmem>>, vector<1x2xf32>
    %c2_11 = arith.constant 2 : index
    %c0_12 = arith.constant 0 : index
    %c0_13 = arith.constant 0 : index
    %14 = vector.load %arg2[%c2_11, %c0_12, %c0_13] : memref<12x16x2xf32, #tpu.memory_space<vmem>>, vector<1x16x2xf32>
    %15 = vector.shape_cast %14 : vector<1x16x2xf32> to vector<16x2xf32>
    %16 = vector.broadcast %13 : vector<1x2xf32> to vector<16x2xf32>
    %17 = arith.mulf %15, %16 : vector<16x2xf32>
    %18 = arith.addf %12, %17 : vector<16x2xf32>
    %c3 = arith.constant 3 : index
    %c0_14 = arith.constant 0 : index
    %19 = vector.load %arg3[%c3, %c0_14] : memref<12x2xf32, #tpu.memory_space<vmem>>, vector<1x2xf32>
    %c3_15 = arith.constant 3 : index
    %c0_16 = arith.constant 0 : index
    %c0_17 = arith.constant 0 : index
    %20 = vector.load %arg2[%c3_15, %c0_16, %c0_17] : memref<12x16x2xf32, #tpu.memory_space<vmem>>, vector<1x16x2xf32>
    %21 = vector.shape_cast %20 : vector<1x16x2xf32> to vector<16x2xf32>
    %22 = vector.broadcast %19 : vector<1x2xf32> to vector<16x2xf32>
    %23 = arith.mulf %21, %22 : vector<16x2xf32>
    %24 = arith.addf %18, %23 : vector<16x2xf32>
    %c4 = arith.constant 4 : index
    %c0_18 = arith.constant 0 : index
    %25 = vector.load %arg3[%c4, %c0_18] : memref<12x2xf32, #tpu.memory_space<vmem>>, vector<1x2xf32>
    %c4_19 = arith.constant 4 : index
    %c0_20 = arith.constant 0 : index
    %c0_21 = arith.constant 0 : index
    %26 = vector.load %arg2[%c4_19, %c0_20, %c0_21] : memref<12x16x2xf32, #tpu.memory_space<vmem>>, vector<1x16x2xf32>
    %27 = vector.shape_cast %26 : vector<1x16x2xf32> to vector<16x2xf32>
    %28 = vector.broadcast %25 : vector<1x2xf32> to vector<16x2xf32>
    %29 = arith.mulf %27, %28 : vector<16x2xf32>
    %30 = arith.addf %24, %29 : vector<16x2xf32>
    %c5 = arith.constant 5 : index
    %c0_22 = arith.constant 0 : index
    %31 = vector.load %arg3[%c5, %c0_22] : memref<12x2xf32, #tpu.memory_space<vmem>>, vector<1x2xf32>
    %c5_23 = arith.constant 5 : index
    %c0_24 = arith.constant 0 : index
    %c0_25 = arith.constant 0 : index
    %32 = vector.load %arg2[%c5_23, %c0_24, %c0_25] : memref<12x16x2xf32, #tpu.memory_space<vmem>>, vector<1x16x2xf32>
    %33 = vector.shape_cast %32 : vector<1x16x2xf32> to vector<16x2xf32>
    %34 = vector.broadcast %31 : vector<1x2xf32> to vector<16x2xf32>
    %35 = arith.mulf %33, %34 : vector<16x2xf32>
    %36 = arith.addf %30, %35 : vector<16x2xf32>
    %c6 = arith.constant 6 : index
    %c0_26 = arith.constant 0 : index
    %37 = vector.load %arg3[%c6, %c0_26] : memref<12x2xf32, #tpu.memory_space<vmem>>, vector<1x2xf32>
    %c6_27 = arith.constant 6 : index
    %c0_28 = arith.constant 0 : index
    %c0_29 = arith.constant 0 : index
    %38 = vector.load %arg2[%c6_27, %c0_28, %c0_29] : memref<12x16x2xf32, #tpu.memory_space<vmem>>, vector<1x16x2xf32>
    %39 = vector.shape_cast %38 : vector<1x16x2xf32> to vector<16x2xf32>
    %40 = vector.broadcast %37 : vector<1x2xf32> to vector<16x2xf32>
    %41 = arith.mulf %39, %40 : vector<16x2xf32>
    %42 = arith.addf %36, %41 : vector<16x2xf32>
    %c7 = arith.constant 7 : index
    %c0_30 = arith.constant 0 : index
    %43 = vector.load %arg3[%c7, %c0_30] : memref<12x2xf32, #tpu.memory_space<vmem>>, vector<1x2xf32>
    %c7_31 = arith.constant 7 : index
    %c0_32 = arith.constant 0 : index
    %c0_33 = arith.constant 0 : index
    %44 = vector.load %arg2[%c7_31, %c0_32, %c0_33] : memref<12x16x2xf32, #tpu.memory_space<vmem>>, vector<1x16x2xf32>
    %45 = vector.shape_cast %44 : vector<1x16x2xf32> to vector<16x2xf32>
    %46 = vector.broadcast %43 : vector<1x2xf32> to vector<16x2xf32>
    %47 = arith.mulf %45, %46 : vector<16x2xf32>
    %48 = arith.addf %42, %47 : vector<16x2xf32>
    %c8 = arith.constant 8 : index
    %c0_34 = arith.constant 0 : index
    %49 = vector.load %arg3[%c8, %c0_34] : memref<12x2xf32, #tpu.memory_space<vmem>>, vector<1x2xf32>
    %c8_35 = arith.constant 8 : index
    %c0_36 = arith.constant 0 : index
    %c0_37 = arith.constant 0 : index
    %50 = vector.load %arg2[%c8_35, %c0_36, %c0_37] : memref<12x16x2xf32, #tpu.memory_space<vmem>>, vector<1x16x2xf32>
    %51 = vector.shape_cast %50 : vector<1x16x2xf32> to vector<16x2xf32>
    %52 = vector.broadcast %49 : vector<1x2xf32> to vector<16x2xf32>
    %53 = arith.mulf %51, %52 : vector<16x2xf32>
    %54 = arith.addf %48, %53 : vector<16x2xf32>
    %c9 = arith.constant 9 : index
    %c0_38 = arith.constant 0 : index
    %55 = vector.load %arg3[%c9, %c0_38] : memref<12x2xf32, #tpu.memory_space<vmem>>, vector<1x2xf32>
    %c9_39 = arith.constant 9 : index
    %c0_40 = arith.constant 0 : index
    %c0_41 = arith.constant 0 : index
    %56 = vector.load %arg2[%c9_39, %c0_40, %c0_41] : memref<12x16x2xf32, #tpu.memory_space<vmem>>, vector<1x16x2xf32>
    %57 = vector.shape_cast %56 : vector<1x16x2xf32> to vector<16x2xf32>
    %58 = vector.broadcast %55 : vector<1x2xf32> to vector<16x2xf32>
    %59 = arith.mulf %57, %58 : vector<16x2xf32>
    %60 = arith.addf %54, %59 : vector<16x2xf32>
    %c10 = arith.constant 10 : index
    %c0_42 = arith.constant 0 : index
    %61 = vector.load %arg3[%c10, %c0_42] : memref<12x2xf32, #tpu.memory_space<vmem>>, vector<1x2xf32>
    %c10_43 = arith.constant 10 : index
    %c0_44 = arith.constant 0 : index
    %c0_45 = arith.constant 0 : index
    %62 = vector.load %arg2[%c10_43, %c0_44, %c0_45] : memref<12x16x2xf32, #tpu.memory_space<vmem>>, vector<1x16x2xf32>
    %63 = vector.shape_cast %62 : vector<1x16x2xf32> to vector<16x2xf32>
    %64 = vector.broadcast %61 : vector<1x2xf32> to vector<16x2xf32>
    %65 = arith.mulf %63, %64 : vector<16x2xf32>
    %66 = arith.addf %60, %65 : vector<16x2xf32>
    %c11 = arith.constant 11 : index
    %c0_46 = arith.constant 0 : index
    %67 = vector.load %arg3[%c11, %c0_46] : memref<12x2xf32, #tpu.memory_space<vmem>>, vector<1x2xf32>
    %c11_47 = arith.constant 11 : index
    %c0_48 = arith.constant 0 : index
    %c0_49 = arith.constant 0 : index
    %68 = vector.load %arg2[%c11_47, %c0_48, %c0_49] : memref<12x16x2xf32, #tpu.memory_space<vmem>>, vector<1x16x2xf32>
    %69 = vector.shape_cast %68 : vector<1x16x2xf32> to vector<16x2xf32>
    %70 = vector.broadcast %67 : vector<1x2xf32> to vector<16x2xf32>
    %71 = arith.mulf %69, %70 : vector<16x2xf32>
    %72 = arith.addf %66, %71 : vector<16x2xf32>
    %c0_50 = arith.constant 0 : index
    %c0_51 = arith.constant 0 : index
    %73 = vector.load %arg5[%c0_50, %c0_51] : memref<16x2xf32, #tpu.memory_space<vmem>>, vector<16x2xf32>
    tpu.vector_store %arg5[%c0_50, %c0_51], %72 {strides = array<i32>} : memref<16x2xf32, #tpu.memory_space<vmem>>, vector<16x2xf32>,
    return
  }
  func.func @transform_0(%arg0: i32, %arg1: i32) -> (i32, i32, i32) {
    %c0_i32 = arith.constant 0 : i32
    %c0_i32_0 = arith.constant 0 : i32
    return %c0_i32, %arg1, %arg0 : i32, i32, i32
  }
  func.func @transform_1(%arg0: i32, %arg1: i32) -> (i32, i32) {
    %c0_i32 = arith.constant 0 : i32
    %c0_i32_0 = arith.constant 0 : i32
    return %c0_i32, %arg0 : i32, i32
  }
  func.func @transform_2(%arg0: i32, %arg1: i32) -> (i32, i32) {
    %c0_i32 = arith.constant 0 : i32
    return %arg1, %arg0 : i32, i32
  }
  func.func @transform_3(%arg0: i32, %arg1: i32) -> (i32, i32) {
    %c0_i32 = arith.constant 0 : i32
    return %arg1, %arg0 : i32, i32
  }
}

</mosaic_0001>

<llo_original>
// kernel: _lti_step_impl.1
$region0: #{_lti_step_impl.1}
  #allocation0 [shape = 'u32[]', space=smem, size = 0x4, offset = 0x4, fixed_abs, tag = 'smem constant byte address 0x4 - core index']
  #allocation1 [shape = 'u32[144,128]{1,0:T(1,128)}', space=vmem, size = 0x12000, scoped, tag = 'internal scratch']
  %s0 = inlined_call_operand.vmem [shape: f32[12,16,2], index: 0, kind: input, shape index: {}]
  %s1 = inlined_call_operand.vmem [shape: f32[12,2], index: 1, kind: input, shape index: {}]
  %s2 = inlined_call_operand.vmem [shape: f32[16,2], index: 2, kind: input, shape index: {}]
  %s3 = inlined_call_operand.vmem [shape: f32[16,2], index: 3, kind: output, shape index: {}]
  %s4 = sld [smem:[#allocation0]]
  $region22: #{_lti_step_impl.1} parent=0
    _
  %s6 = ssub.s32 1, %s4
  %s7 = scalar_select 0, %s6, %s4
  // Predicated region
  $region2: #{_lti_step_impl.1} parent=0 // pred_check
    _
  $region3: #{_lti_step_impl.1} parent=0 // pred_check_branch
    %9 = sbr.rel (0) target = $region5
  $region4: #{_lti_step_impl.1} parent=0 // pred_region
    _
  $region5: #{_lti_step_impl.1} parent=0 // pred_fallthru
    _
  // Predicated region
  $region6: #{_lti_step_impl.1} parent=0 // pred_check
    _
  $region7: #{_lti_step_impl.1} parent=0 // pred_check_branch
    %11 = sbr.rel (0) target = $region9
  $region8: #{_lti_step_impl.1} parent=0 // pred_region
    _
  $region9: #{_lti_step_impl.1} parent=0 // pred_fallthru
    _
  // Predicated region
  $region10: #{_lti_step_impl.1} parent=0 // pred_check
    _
  $region11: #{_lti_step_impl.1} parent=0 // pred_check_branch
    %13 = sbr.rel (0) target = $region13
  $region12: #{_lti_step_impl.1} parent=0 // pred_region
    _
  $region13: #{_lti_step_impl.1} parent=0 // pred_fallthru
    _
  %v14 = vld [vmem:[%s2] sm:$0xff]
  %v15 = vld [vmem:[%s2 + $0x8] sm:$0xff]
  %v16 = vld [vmem:[%s1] sm:$0x1]
  %v17 = vld [vmem:[%s0] sm:$0xff]
  %v18 = vld [vmem:[%s0 + $0x8] sm:$0xff]
  %v19 = vlaneseq
  %v20 = vshrl.u32 %v19, 7
  %v21 = vsub.s32 0, %v20
  %v22 = vrot.slane %v16, %v21
  %v23 = vmul.f32 %v17, %v22
  %v24 = vmul.f32 %v18, %v22
  %v25 = vadd.f32 %v14, %v23
  %v26 = vadd.f32 %v15, %v24
  %v27 = vld [vmem:[%s1 + $0x1] sm:$0x1]
  %s28 = scalar_lea.vmem %s0, 16
  %v29 = vld [vmem:[%s28] sm:$0xff]
  %v30 = vld [vmem:[%s28 + $0x8] sm:$0xff]
  %v31 = vlaneseq
  %v32 = vshrl.u32 %v31, 7
  %v33 = vsub.s32 0, %v32
  %v34 = vrot.slane %v27, %v33
  %v35 = vmul.f32 %v29, %v34
  %v36 = vmul.f32 %v30, %v34
  %v37 = vadd.f32 %v25, %v35
  %v38 = vadd.f32 %v26, %v36
  %v39 = vld [vmem:[%s1 + $0x2] sm:$0x1]
  %s40 = scalar_lea.vmem %s0, 32
  %v41 = vld [vmem:[%s40] sm:$0xff]
  %v42 = vld [vmem:[%s40 + $0x8] sm:$0xff]
  %v43 = vlaneseq
  %v44 = vshrl.u32 %v43, 7
  %v45 = vsub.s32 0, %v44
  %v46 = vrot.slane %v39, %v45
  %v47 = vmul.f32 %v41, %v46
  %v48 = vmul.f32 %v42, %v46
  %v49 = vadd.f32 %v37, %v47
  %v50 = vadd.f32 %v38, %v48
  %v51 = vld [vmem:[%s1 + $0x3] sm:$0x1]
  %s52 = scalar_lea.vmem %s0, 48
  %v53 = vld [vmem:[%s52] sm:$0xff]
  %v54 = vld [vmem:[%s52 + $0x8] sm:$0xff]
  %v55 = vlaneseq
  %v56 = vshrl.u32 %v55, 7
  %v57 = vsub.s32 0, %v56
  %v58 = vrot.slane %v51, %v57
  %v59 = vmul.f32 %v53, %v58
  %v60 = vmul.f32 %v54, %v58
  %v61 = vadd.f32 %v49, %v59
  %v62 = vadd.f32 %v50, %v60
  %v63 = vld [vmem:[%s1 + $0x4] sm:$0x1]
  %s64 = scalar_lea.vmem %s0, 64
  %v65 = vld [vmem:[%s64] sm:$0xff]
  %v66 = vld [vmem:[%s64 + $0x8] sm:$0xff]
  %v67 = vlaneseq
  %v68 = vshrl.u32 %v67, 7
  %v69 = vsub.s32 0, %v68
  %v70 = vrot.slane %v63, %v69
  %v71 = vmul.f32 %v65, %v70
  %v72 = vmul.f32 %v66, %v70
  %v73 = vadd.f32 %v61, %v71
  %v74 = vadd.f32 %v62, %v72
  %v75 = vld [vmem:[%s1 + $0x5] sm:$0x1]
  %s76 = scalar_lea.vmem %s0, 80
  %v77 = vld [vmem:[%s76] sm:$0xff]
  %v78 = vld [vmem:[%s76 + $0x8] sm:$0xff]
  %v79 = vlaneseq
  %v80 = vshrl.u32 %v79, 7
  %v81 = vsub.s32 0, %v80
  %v82 = vrot.slane %v75, %v81
  %v83 = vmul.f32 %v77, %v82
  %v84 = vmul.f32 %v78, %v82
  %v85 = vadd.f32 %v73, %v83
  %v86 = vadd.f32 %v74, %v84
  %v87 = vld [vmem:[%s1 + $0x6] sm:$0x1]
  %s88 = scalar_lea.vmem %s0, 96
  %v89 = vld [vmem:[%s88] sm:$0xff]
  %v90 = vld [vmem:[%s88 + $0x8] sm:$0xff]
  %v91 = vlaneseq
  %v92 = vshrl.u32 %v91, 7
  %v93 = vsub.s32 0, %v92
  %v94 = vrot.slane %v87, %v93
  %v95 = vmul.f32 %v89, %v94
  %v96 = vmul.f32 %v90, %v94
  %v97 = vadd.f32 %v85, %v95
  %v98 = vadd.f32 %v86, %v96
  %v99 = vld [vmem:[%s1 + $0x7] sm:$0x1]
  %s100 = scalar_lea.vmem %s0, 112
  %v101 = vld [vmem:[%s100] sm:$0xff]
  %v102 = vld [vmem:[%s100 + $0x8] sm:$0xff]
  %v103 = vlaneseq
  %v104 = vshrl.u32 %v103, 7
  %v105 = vsub.s32 0, %v104
  %v106 = vrot.slane %v99, %v105
  %v107 = vmul.f32 %v101, %v106
  %v108 = vmul.f32 %v102, %v106
  %v109 = vadd.f32 %v97, %v107
  %v110 = vadd.f32 %v98, %v108
  %v111 = vld [vmem:[%s1 + $0x8] sm:$0x1]
  %s112 = scalar_lea.vmem %s0, 128
  %v113 = vld [vmem:[%s112] sm:$0xff]
  %v114 = vld [vmem:[%s112 + $0x8] sm:$0xff]
  %v115 = vlaneseq
  %v116 = vshrl.u32 %v115, 7
  %v117 = vsub.s32 0, %v116
  %v118 = vrot.slane %v111, %v117
  %v119 = vmul.f32 %v113, %v118
  %v120 = vmul.f32 %v114, %v118
  %v121 = vadd.f32 %v109, %v119
  %v122 = vadd.f32 %v110, %v120
  %v123 = vld [vmem:[%s1 + $0x9] sm:$0x1]
  %s124 = scalar_lea.vmem %s0, 144
  %v125 = vld [vmem:[%s124] sm:$0xff]
  %v126 = vld [vmem:[%s124 + $0x8] sm:$0xff]
  %v127 = vlaneseq
  %v128 = vshrl.u32 %v127, 7
  %v129 = vsub.s32 0, %v128
  %v130 = vrot.slane %v123, %v129
  %v131 = vmul.f32 %v125, %v130
  %v132 = vmul.f32 %v126, %v130
  %v133 = vadd.f32 %v121, %v131
  %v134 = vadd.f32 %v122, %v132
  %v135 = vld [vmem:[%s1 + $0xa] sm:$0x1]
  %s136 = scalar_lea.vmem %s0, 160
  %v137 = vld [vmem:[%s136] sm:$0xff]
  %v138 = vld [vmem:[%s136 + $0x8] sm:$0xff]
  %v139 = vlaneseq
  %v140 = vshrl.u32 %v139, 7
  %v141 = vsub.s32 0, %v140
  %v142 = vrot.slane %v135, %v141
  %v143 = vmul.f32 %v137, %v142
  %v144 = vmul.f32 %v138, %v142
  %v145 = vadd.f32 %v133, %v143
  %v146 = vadd.f32 %v134, %v144
  %v147 = vld [vmem:[%s1 + $0xb] sm:$0x1]
  %s148 = scalar_lea.vmem %s0, 176
  %v149 = vld [vmem:[%s148] sm:$0xff]
  %v150 = vld [vmem:[%s148 + $0x8] sm:$0xff]
  %v151 = vlaneseq
  %v152 = vshrl.u32 %v151, 7
  %v153 = vsub.s32 0, %v152
  %v154 = vrot.slane %v147, %v153
  %v155 = vmul.f32 %v149, %v154
  %v156 = vmul.f32 %v150, %v154
  %v157 = vadd.f32 %v145, %v155
  %v158 = vadd.f32 %v146, %v156
  %vm159 = vcmask 15360
  %160 = vst.msk [vmem:[%s3] sm:$0xff] %vm159, %v157
  %161 = vst.msk [vmem:[%s3 + $0x8] sm:$0xff] %vm159, %v158
  // Predicated region
  $region14: #{_lti_step_impl.1} parent=0 // pred_check
    _
  $region15: #{_lti_step_impl.1} parent=0 // pred_check_branch
    %163 = sbr.rel (0) target = $region17
  $region16: #{_lti_step_impl.1} parent=0 // pred_region
    _
  $region17: #{_lti_step_impl.1} parent=0 // pred_fallthru
    _
  // Predicated region
  $region18: #{_lti_step_impl.1} parent=0 // pred_check
    _
  $region19: #{_lti_step_impl.1} parent=0 // pred_check_branch
    %165 = sbr.rel (0) target = $region21
  $region20: #{_lti_step_impl.1} parent=0 // pred_region
    _
  $region21: #{_lti_step_impl.1} parent=0 // pred_fallthru
    _

</llo_original>
